<compile_context>
chip_gen: v5e
topology: v5e:2x2
jax: 0.10.0
libtpu: 0.0.40
codegen_flags: <defaults>
</compile_context>

<pallas_src>
import functools

import jax
import jax.numpy as jnp
from jax.experimental import pallas as pl
from jax.experimental.pallas import tpu as pltpu

LANE = 128  # TPU vreg lane width


def _round_up(x, m):
    return (x + m - 1) // m * m


def _dense_mmd_encoder_kernel(x_ref, w1_ref, b1_ref, w2_ref, b2_ref, eps_ref,
                              out_ref, *, l_pad):
    """h = ELU(x@W1+b1); [mu|logvar] = h@W2+b2 (one fused MXU matmul);
    z = mu + eps*exp(0.5*logvar); write one lane-dense slab [TB, 3*l_pad] = z|mu|logvar."""
    # fc1 on the MXU (bf16 operands, f32 accumulation); epilogue kept in f32.
    h = jnp.dot(x_ref[...], w1_ref[...],
                preferred_element_type=jnp.float32) + b1_ref[...]
    # ELU (alpha=1).  Clamping before exp avoids inf on the discarded branch.
    # (jnp.expm1 would be marginally tighter near 0; exp(x)-1 is kept — the f32
    # cancellation error is <1e-7 absolute and exp is a guaranteed Mosaic lowering.)
    h = jnp.where(h > 0.0, h, jnp.exp(jnp.minimum(h, 0.0)) - 1.0)

    # Fused fc2_mean | fc2_logvar: one MXU matmul over 2*l_pad output columns.
    hw2 = jnp.dot(h.astype(w2_ref.dtype), w2_ref[...],
                  preferred_element_type=jnp.float32) + b2_ref[...]
    mu = hw2[:, :l_pad]
    logvar = hw2[:, l_pad:]

    # Reparameterization trick. Padded lanes carry eps=0 / W2=0, so they stay benign
    # and are sliced off in the wrapper.  exp() runs on the EUP (free slot).
    z = mu + eps_ref[...] * jnp.exp(0.5 * logvar)

    # Single lane-dense output slab: [z | mu | logvar]; every store is a full,
    # 128-lane-aligned, unmasked vst.
    out_ref[:, 0 * l_pad:1 * l_pad] = z
    out_ref[:, 1 * l_pad:2 * l_pad] = mu
    out_ref[:, 2 * l_pad:3 * l_pad] = logvar


@functools.partial(jax.jit, static_argnames=("block_b",))
def dense_mmd_encoder_forward(x, w1, b1, w2m, b2m, w2l, b2l, eps, *, block_b=512):
    """Forward of DenseMMDEncoder: returns (z, z_mean, z_logvar).

    Weights are stored transposed ([in, out]) so the kernel computes x @ W + b.
    """
    B, d_in = x.shape
    hidden = w1.shape[1]
    latent = w2m.shape[1]
    l_pad = _round_up(latent, LANE)

    # Batch tile: multiple of 8 sublanes.  block_b=512 keeps double-buffered
    # x/eps/out tiles well under the 32 MiB scoped-VMEM default, so it is safe on
    # v7x's 64 MiB physical VMEM; v5e/v6e have headroom to sweep block_b upward.
    tb = min(block_b, _round_up(B, 8))
    b_pad = _round_up(B, tb)

    compute_dtype = jnp.bfloat16  # MXU-native; accumulation stays f32 in-kernel

    # bf16 activations/weights (halves DMA bytes, hits MXU bf16 peak); biases f32.
    x_p = jnp.zeros((b_pad, d_in), compute_dtype).at[:B].set(x.astype(compute_dtype))
    w1_c = w1.astype(compute_dtype)
    b1_r = b1.reshape(1, hidden).astype(jnp.float32)

    # Fuse + pad the two heads into one [hidden, 2*l_pad] weight: mu occupies
    # columns [0, l_pad), logvar columns [l_pad, 2*l_pad); padded columns are zero.
    w2 = jnp.zeros((hidden, 2 * l_pad), compute_dtype)
    w2 = w2.at[:, :latent].set(w2m.astype(compute_dtype))
    w2 = w2.at[:, l_pad:l_pad + latent].set(w2l.astype(compute_dtype))
    b2 = jnp.zeros((1, 2 * l_pad), jnp.float32)
    b2 = b2.at[:, :latent].set(b2m.reshape(1, latent).astype(jnp.float32))
    b2 = b2.at[:, l_pad:l_pad + latent].set(b2l.reshape(1, latent).astype(jnp.float32))

    # eps stays a kernel input for deterministic parity with torch.randn_like;
    # it could be generated in-kernel via pltpu.prng_* to drop one DMA stream.
    eps_p = jnp.zeros((b_pad, l_pad), jnp.float32).at[:B, :latent].set(
        eps.astype(jnp.float32))

    kernel = functools.partial(_dense_mmd_encoder_kernel, l_pad=l_pad)

    out = pl.pallas_call(
        kernel,
        out_shape=jax.ShapeDtypeStruct((b_pad, 3 * l_pad), jnp.float32),
        grid=(b_pad // tb,),
        in_specs=[
            pl.BlockSpec((tb, d_in), lambda i: (i, 0)),           # x: streamed over batch
            pl.BlockSpec((d_in, hidden), lambda i: (0, 0)),       # w1: VMEM-resident
            pl.BlockSpec((1, hidden), lambda i: (0, 0)),          # b1: VMEM-resident
            pl.BlockSpec((hidden, 2 * l_pad), lambda i: (0, 0)),  # fused w2: VMEM-resident
            pl.BlockSpec((1, 2 * l_pad), lambda i: (0, 0)),       # fused b2: VMEM-resident
            pl.BlockSpec((tb, l_pad), lambda i: (i, 0)),          # eps: streamed over batch
        ],
        out_specs=pl.BlockSpec((tb, 3 * l_pad), lambda i: (i, 0)),
        compiler_params=pltpu.CompilerParams(
            # batch tiles are independent -> v7x can shard them across its 2 TCs;
            # no-op on v5e/v6e (1 TC).
            dimension_semantics=("parallel",)),
    )(x_p, w1_c, b1_r, w2, b2, eps_p)

    z = out[:B, 0 * l_pad:0 * l_pad + latent]
    z_mean = out[:B, 1 * l_pad:1 * l_pad + latent]
    z_logvar = out[:B, 2 * l_pad:2 * l_pad + latent]
    return z, z_mean, z_logvar


def init_linear_params(key, fan_in, fan_out):
    """PyTorch nn.Linear-style init: U(-1/sqrt(fan_in), 1/sqrt(fan_in)).
    Weight is returned already transposed to [fan_in, fan_out] for `x @ W`."""
    kw, kb = jax.random.split(key)
    bound = 1.0 / jnp.sqrt(float(fan_in))
    w = jax.random.uniform(kw, (fan_in, fan_out), jnp.float32, -bound, bound)
    b = jax.random.uniform(kb, (1, fan_out), jnp.float32, -bound, bound)
    return w, b


if __name__ == "__main__":
    # Small shapes consistent with the module (tabular-data encoder).
    batch = 8
    input_dim = 32
    intermediate_dim = 64
    latent_dim = 20  # VAEEncoder default

    root = jax.random.PRNGKey(0)
    k_x, k_fc1, k_fc2m, k_fc2l, k_eps = jax.random.split(root, 5)

    x = jax.random.normal(k_x, (batch, input_dim), jnp.float32)
    w1, b1 = init_linear_params(k_fc1, input_dim, intermediate_dim)
    w2m, b2m = init_linear_params(k_fc2m, intermediate_dim, latent_dim)
    w2l, b2l = init_linear_params(k_fc2l, intermediate_dim, latent_dim)

    # eps ~ N(0,1), generated outside the kernel (mirrors torch.randn_like(std)).
    eps = jax.random.normal(k_eps, (batch, latent_dim), jnp.float32)

    z, z_mean, z_logvar = dense_mmd_encoder_forward(
        x, w1, b1, w2m, b2m, w2l, b2l, eps)
    jax.block_until_ready((z, z_mean, z_logvar))

    # Pure-JAX reference with the same bf16-operand / f32-accumulate math.
    bf = jnp.bfloat16
    h_ref = jnp.dot(x.astype(bf), w1.astype(bf),
                    preferred_element_type=jnp.float32) + b1
    h_ref = jnp.where(h_ref > 0, h_ref, jnp.exp(jnp.minimum(h_ref, 0.0)) - 1.0)
    hb = h_ref.astype(bf)
    mu_ref = jnp.dot(hb, w2m.astype(bf), preferred_element_type=jnp.float32) + b2m
    lv_ref = jnp.dot(hb, w2l.astype(bf), preferred_element_type=jnp.float32) + b2l
    z_ref = mu_ref + eps * jnp.exp(0.5 * lv_ref)

    assert z.shape == (batch, latent_dim)
    assert z_mean.shape == (batch, latent_dim)
    assert z_logvar.shape == (batch, latent_dim)
    assert jnp.allclose(z_mean, mu_ref, atol=2e-3, rtol=2e-3)
    assert jnp.allclose(z_logvar, lv_ref, atol=2e-3, rtol=2e-3)
    assert jnp.allclose(z, z_ref, atol=2e-3, rtol=2e-3)

    print("KERNEL_OK")
</pallas_src>

<mosaic_0001>
module attributes {stable_mosaic.version = 11 : i64} {
  func.func @_dense_mmd_encoder_kernel(%arg0: i32, %arg1: memref<8x32xbf16, #tpu.memory_space<vmem>>, %arg2: memref<32x64xbf16, #tpu.memory_space<vmem>>, %arg3: memref<1x64xf32, #tpu.memory_space<vmem>>, %arg4: memref<64x256xbf16, #tpu.memory_space<vmem>>, %arg5: memref<1x256xf32, #tpu.memory_space<vmem>>, %arg6: memref<8x128xf32, #tpu.memory_space<vmem>>, %arg7: memref<8x384xf32, #tpu.memory_space<vmem>>) attributes {dimension_semantics = [#tpu.dimension_semantics<parallel>], iteration_bounds = array<i64: 1>, scalar_prefetch = 0 : i64, scratch_operands = 0 : i64, tpu.core_type = #tpu.core_type<tc>, window_params = [{transform_indices = @transform_0, window_bounds = array<i64: 8, 32>}, {pipeline_mode = #tpu.pipeline_mode<synchronous>, transform_indices = @transform_1, window_bounds = array<i64: 32, 64>}, {pipeline_mode = #tpu.pipeline_mode<synchronous>, transform_indices = @transform_2, window_bounds = array<i64: 1, 64>}, {pipeline_mode = #tpu.pipeline_mode<synchronous>, transform_indices = @transform_3, window_bounds = array<i64: 64, 256>}, {pipeline_mode = #tpu.pipeline_mode<synchronous>, transform_indices = @transform_4, window_bounds = array<i64: 1, 256>}, {transform_indices = @transform_5, window_bounds = array<i64: 8, 128>}, {transform_indices = @transform_6, window_bounds = array<i64: 8, 384>}]} {
    %c0 = arith.constant 0 : index
    %c0_0 = arith.constant 0 : index
    %0 = vector.load %arg1[%c0, %c0_0] : memref<8x32xbf16, #tpu.memory_space<vmem>>, vector<8x32xbf16>
    %c0_1 = arith.constant 0 : index
    %c0_2 = arith.constant 0 : index
    %1 = vector.load %arg2[%c0_1, %c0_2] : memref<32x64xbf16, #tpu.memory_space<vmem>>, vector<32x64xbf16>
    %cst = arith.constant dense<0.000000e+00> : vector<8x64xf32>
    %2 = tpu.matmul %0, %1, %cst {dimension_numbers = #tpu.dot_dimension_numbers<[1], [0], [0], [1], [0, 0, 1, 1], [], []>} : vector<8x32xbf16>, vector<32x64xbf16>, vector<8x64xf32> -> vector<8x64xf32>
    %c0_3 = arith.constant 0 : index
    %c0_4 = arith.constant 0 : index
    %3 = vector.load %arg3[%c0_3, %c0_4] : memref<1x64xf32, #tpu.memory_space<vmem>>, vector<1x64xf32>
    %4 = vector.broadcast %3 : vector<1x64xf32> to vector<8x64xf32>
    %5 = arith.addf %2, %4 : vector<8x64xf32>
    %cst_5 = arith.constant 0.000000e+00 : f32
    %6 = vector.broadcast %cst_5 : f32 to vector<8x64xf32>
    %7 = arith.cmpf ogt, %5, %6 : vector<8x64xf32>
    %cst_6 = arith.constant 0.000000e+00 : f32
    %8 = vector.broadcast %cst_6 : f32 to vector<8x64xf32>
    %9 = arith.minimumf %5, %8 : vector<8x64xf32>
    %10 = math.exp %9 : vector<8x64xf32>
    %cst_7 = arith.constant 1.000000e+00 : f32
    %11 = vector.broadcast %cst_7 : f32 to vector<8x64xf32>
    %12 = arith.subf %10, %11 : vector<8x64xf32>
    %13 = arith.select %7, %5, %12 : vector<8x64xi1>, vector<8x64xf32>
    %14 = arith.truncf %13 : vector<8x64xf32> to vector<8x64xbf16>
    %c0_8 = arith.constant 0 : index
    %c0_9 = arith.constant 0 : index
    %15 = vector.load %arg4[%c0_8, %c0_9] : memref<64x256xbf16, #tpu.memory_space<vmem>>, vector<64x256xbf16>
    %cst_10 = arith.constant dense<0.000000e+00> : vector<8x256xf32>
    %16 = tpu.matmul %14, %15, %cst_10 {dimension_numbers = #tpu.dot_dimension_numbers<[1], [0], [0], [1], [0, 0, 1, 1], [], []>} : vector<8x64xbf16>, vector<64x256xbf16>, vector<8x256xf32> -> vector<8x256xf32>
    %c0_11 = arith.constant 0 : index
    %c0_12 = arith.constant 0 : index
    %17 = vector.load %arg5[%c0_11, %c0_12] : memref<1x256xf32, #tpu.memory_space<vmem>>, vector<1x256xf32>
    %18 = vector.broadcast %17 : vector<1x256xf32> to vector<8x256xf32>
    %19 = arith.addf %16, %18 : vector<8x256xf32>
    %20 = vector.extract_strided_slice %19 {offsets = [0, 0], sizes = [8, 128], strides = [1, 1]} : vector<8x256xf32> to vector<8x128xf32>
    %21 = vector.extract_strided_slice %19 {offsets = [0, 128], sizes = [8, 128], strides = [1, 1]} : vector<8x256xf32> to vector<8x128xf32>
    %c0_13 = arith.constant 0 : index
    %c0_14 = arith.constant 0 : index
    %22 = vector.load %arg6[%c0_13, %c0_14] : memref<8x128xf32, #tpu.memory_space<vmem>>, vector<8x128xf32>
    %cst_15 = arith.constant 5.000000e-01 : f32
    %23 = vector.broadcast %cst_15 : f32 to vector<8x128xf32>
    %24 = arith.mulf %23, %21 : vector<8x128xf32>
    %25 = math.exp %24 : vector<8x128xf32>
    %26 = arith.mulf %22, %25 : vector<8x128xf32>
    %27 = arith.addf %20, %26 : vector<8x128xf32>
    %c0_16 = arith.constant 0 : index
    %c0_17 = arith.constant 0 : index
    %28 = vector.load %arg7[%c0_16, %c0_17] : memref<8x384xf32, #tpu.memory_space<vmem>>, vector<8x128xf32>
    tpu.vector_store %arg7[%c0_16, %c0_17], %27 {strides = array<i32>} : memref<8x384xf32, #tpu.memory_space<vmem>>, vector<8x128xf32>,
    %c0_18 = arith.constant 0 : index
    %c128 = arith.constant 128 : index
    %29 = vector.load %arg7[%c0_18, %c128] : memref<8x384xf32, #tpu.memory_space<vmem>>, vector<8x128xf32>
    tpu.vector_store %arg7[%c0_18, %c128], %20 {strides = array<i32>} : memref<8x384xf32, #tpu.memory_space<vmem>>, vector<8x128xf32>,
    %c0_19 = arith.constant 0 : index
    %c256 = arith.constant 256 : index
    %30 = vector.load %arg7[%c0_19, %c256] : memref<8x384xf32, #tpu.memory_space<vmem>>, vector<8x128xf32>
    tpu.vector_store %arg7[%c0_19, %c256], %21 {strides = array<i32>} : memref<8x384xf32, #tpu.memory_space<vmem>>, vector<8x128xf32>,
    return
  }
  func.func @transform_0(%arg0: i32) -> (i32, i32) {
    %c0_i32 = arith.constant 0 : i32
    %c0_i32_0 = arith.constant 0 : i32
    return %arg0, %c0_i32 : i32, i32
  }
  func.func @transform_1(%arg0: i32) -> (i32, i32) {
    %c0_i32 = arith.constant 0 : i32
    %c0_i32_0 = arith.constant 0 : i32
    %c0_i32_1 = arith.constant 0 : i32
    return %c0_i32, %c0_i32_0 : i32, i32
  }
  func.func @transform_2(%arg0: i32) -> (i32, i32) {
    %c0_i32 = arith.constant 0 : i32
    %c0_i32_0 = arith.constant 0 : i32
    %c0_i32_1 = arith.constant 0 : i32
    return %c0_i32, %c0_i32_0 : i32, i32
  }
  func.func @transform_3(%arg0: i32) -> (i32, i32) {
    %c0_i32 = arith.constant 0 : i32
    %c0_i32_0 = arith.constant 0 : i32
    %c0_i32_1 = arith.constant 0 : i32
    return %c0_i32, %c0_i32_0 : i32, i32
  }
  func.func @transform_4(%arg0: i32) -> (i32, i32) {
    %c0_i32 = arith.constant 0 : i32
    %c0_i32_0 = arith.constant 0 : i32
    %c0_i32_1 = arith.constant 0 : i32
    return %c0_i32, %c0_i32_0 : i32, i32
  }
  func.func @transform_5(%arg0: i32) -> (i32, i32) {
    %c0_i32 = arith.constant 0 : i32
    %c0_i32_0 = arith.constant 0 : i32
    return %arg0, %c0_i32 : i32, i32
  }
  func.func @transform_6(%arg0: i32) -> (i32, i32) {
    %c0_i32 = arith.constant 0 : i32
    %c0_i32_0 = arith.constant 0 : i32
    return %arg0, %c0_i32 : i32, i32
  }
}

</mosaic_0001>

<llo_original>
// kernel: dense_mmd_encoder_forward.1
$region0: #{dense_mmd_encoder_forward.1}
  #allocation0 [shape = 'u32[]', space=smem, size = 0x4, offset = 0x4, fixed_abs, tag = 'smem constant byte address 0x4 - core index']
  #allocation1 [shape = 'u32[72,128]{1,0:T(1,128)}', space=vmem, size = 0x9000, scoped, tag = 'internal scratch']
  %s0 = inlined_call_operand.vmem [shape: bf16[8,32], index: 0, kind: input, shape index: {}]
  %s1 = inlined_call_operand.vmem [shape: bf16[32,64], index: 1, kind: input, shape index: {}]
  %s2 = inlined_call_operand.vmem [shape: f32[1,64], index: 2, kind: input, shape index: {}]
  %s3 = inlined_call_operand.vmem [shape: bf16[64,256], index: 3, kind: input, shape index: {}]
  %s4 = inlined_call_operand.vmem [shape: f32[1,256], index: 4, kind: input, shape index: {}]
  %s5 = inlined_call_operand.vmem [shape: f32[8,128], index: 5, kind: input, shape index: {}]
  %s6 = inlined_call_operand.vmem [shape: f32[8,384], index: 6, kind: output, shape index: {}]
  %s7 = sld [smem:[#allocation0]]
  $region34: #{dense_mmd_encoder_forward.1} parent=0
    _
  %s9 = ssub.s32 1, %s7
  %s10 = scalar_select 0, %s9, %s7
  // Predicated region
  $region2: #{dense_mmd_encoder_forward.1} parent=0 // pred_check
    _
  $region3: #{dense_mmd_encoder_forward.1} parent=0 // pred_check_branch
    %12 = sbr.rel (0) target = $region5
  $region4: #{dense_mmd_encoder_forward.1} parent=0 // pred_region
    _
  $region5: #{dense_mmd_encoder_forward.1} parent=0 // pred_fallthru
    _
  // Predicated region
  $region6: #{dense_mmd_encoder_forward.1} parent=0 // pred_check
    _
  $region7: #{dense_mmd_encoder_forward.1} parent=0 // pred_check_branch
    %14 = sbr.rel (0) target = $region9
  $region8: #{dense_mmd_encoder_forward.1} parent=0 // pred_region
    _
  $region9: #{dense_mmd_encoder_forward.1} parent=0 // pred_fallthru
    _
  // Predicated region
  $region10: #{dense_mmd_encoder_forward.1} parent=0 // pred_check
    _
  $region11: #{dense_mmd_encoder_forward.1} parent=0 // pred_check_branch
    %16 = sbr.rel (0) target = $region13
  $region12: #{dense_mmd_encoder_forward.1} parent=0 // pred_region
    _
  $region13: #{dense_mmd_encoder_forward.1} parent=0 // pred_fallthru
    _
  // Predicated region
  $region14: #{dense_mmd_encoder_forward.1} parent=0 // pred_check
    _
  $region15: #{dense_mmd_encoder_forward.1} parent=0 // pred_check_branch
    %18 = sbr.rel (0) target = $region17
  $region16: #{dense_mmd_encoder_forward.1} parent=0 // pred_region
    _
  $region17: #{dense_mmd_encoder_forward.1} parent=0 // pred_fallthru
    _
  // Predicated region
  $region18: #{dense_mmd_encoder_forward.1} parent=0 // pred_check
    _
  $region19: #{dense_mmd_encoder_forward.1} parent=0 // pred_check_branch
    %20 = sbr.rel (0) target = $region21
  $region20: #{dense_mmd_encoder_forward.1} parent=0 // pred_region
    _
  $region21: #{dense_mmd_encoder_forward.1} parent=0 // pred_fallthru
    _
  // Predicated region
  $region22: #{dense_mmd_encoder_forward.1} parent=0 // pred_check
    _
  $region23: #{dense_mmd_encoder_forward.1} parent=0 // pred_check_branch
    %22 = sbr.rel (0) target = $region25
  $region24: #{dense_mmd_encoder_forward.1} parent=0 // pred_region
    _
  $region25: #{dense_mmd_encoder_forward.1} parent=0 // pred_fallthru
    _
  %v24 = vld [vmem:[%s0] sm:$0xf]
  %v25 = vld [vmem:[%s1] sm:$0xf]
  %v26 = vld [vmem:[%s1 + $0x4] sm:$0xf]
  %v27 = vld [vmem:[%s1 + $0x8] sm:$0xf]
  %v28 = vld [vmem:[%s1 + $0xc] sm:$0xf]
  %v29 = vld [vmem:[%s2] sm:$0x1]
  %v31 = vperm.slane %v29, 0
  %v37 = vunpack.c.l.b16 %v25
  %v38 = vunpack.c.l.b16 %v26
  %v39 = vunpack.c.l.b16 %v27
  %v40 = vunpack.c.l.b16 %v28
  %v41 = vpack.c.b16 %v38, %v37
  %v42 = vpack.c.b16 %v40, %v39
  %vm45 = vcmask 261120
  %v47 = vsel %vm45, %v24, 0
  %49 = vmatpush.bf16.msra.mxu0 0
  %50 = vmatpush.bf16.msra.mxu0 0
  %51 = vmatpush.bf16.msra.mxu0 0
  %52 = vmatpush.bf16.msra.mxu0 0
  %53 = vmatpush.bf16.msra.mxu0 0
  %54 = vmatpush.bf16.msra.mxu0 0
  %55 = vmatpush.bf16.msra.mxu0 %v42
  %56 = vmatpush.bf16.msra.mxu0 %v41
  %57 = vmatmul.bf16.gmra.mxu0 %v47
  %v58 = vpop.f32.mrf.mxu0
  %v59 = vadd.f32 %v31, %v58
  %v60 = vpop.f32.mrf.mxu0
  %61 = vdwg.mxu0
  %vm62 = vcmp.gt.f32.partialorder %v59, 0.0
  %v63 = vmin.f32 %v59, 0.0
  %v64 = vmul.f32 %v63, 1.442695
  %v65 = vpow.pop %v64
  %v66 = vsub.f32 %v65, 1.0
  %v67 = vsel %vm62, %v59, %v66
  %v68 = vpack.c.bf16 %v67, %v67
  %v69 = vld [vmem:[%s3] sm:$0xff]
  %v70 = vld [vmem:[%s3 + $0x8] sm:$0xff]
  %v71 = vld [vmem:[%s3 + $0x10] sm:$0xff]
  %v72 = vld [vmem:[%s3 + $0x18] sm:$0xff]
  %v73 = vld [vmem:[%s3 + $0x20] sm:$0xff]
  %v74 = vld [vmem:[%s3 + $0x28] sm:$0xff]
  %v75 = vld [vmem:[%s3 + $0x30] sm:$0xff]
  %v76 = vld [vmem:[%s3 + $0x38] sm:$0xff]
  %v77 = vld [vmem:[%s4] sm:$0x3]
  %v79 = vperm.slane %v77, 0
  %v80 = vperm.slane %v77, 1
  %v91 = vunpack.c.l.b16 %v69
  %v92 = vunpack.c.h.b16 %v69
  %v93 = vunpack.c.l.b16 %v70
  %v94 = vunpack.c.h.b16 %v70
  %v95 = vunpack.c.l.b16 %v71
  %v96 = vunpack.c.h.b16 %v71
  %v97 = vunpack.c.l.b16 %v72
  %v98 = vunpack.c.h.b16 %v72
  %v99 = vunpack.c.l.b16 %v73
  %v100 = vunpack.c.h.b16 %v73
  %v101 = vunpack.c.l.b16 %v74
  %v102 = vunpack.c.h.b16 %v74
  %v103 = vunpack.c.l.b16 %v75
  %v104 = vunpack.c.h.b16 %v75
  %v105 = vunpack.c.l.b16 %v76
  %v106 = vunpack.c.h.b16 %v76
  %v107 = vpack.c.b16 %v93, %v91
  %v108 = vpack.c.b16 %v94, %v92
  %v109 = vpack.c.b16 %v97, %v95
  %v110 = vpack.c.b16 %v98, %v96
  %v111 = vpack.c.b16 %v101, %v99
  %v112 = vpack.c.b16 %v102, %v100
  %v113 = vpack.c.b16 %v105, %v103
  %v114 = vpack.c.b16 %v106, %v104
  %vm123 = vcmask 523264
  %v125 = vsel %vm123, %v68, 0
  %127 = vmatpush.bf16.msra.mxu0 0
  %128 = vmatpush.bf16.msra.mxu0 0
  %129 = vmatpush.bf16.msra.mxu0 0
  %130 = vmatpush.bf16.msra.mxu0 0
  %131 = vmatpush.bf16.msra.mxu0 %v113
  %132 = vmatpush.bf16.msra.mxu0 %v111
  %133 = vmatpush.bf16.msra.mxu0 %v109
  %134 = vmatpush.bf16.msra.mxu0 %v107
  %135 = vmatmul.bf16.gmra.mxu0 %v125
  %v136 = vpop.f32.mrf.mxu0
  %v137 = vadd.f32 %v79, %v136
  %v138 = vpop.f32.mrf.mxu0
  %139 = vdwg.mxu0
  %140 = vmatpush.bf16.msra.mxu0 0
  %141 = vmatpush.bf16.msra.mxu0 0
  %142 = vmatpush.bf16.msra.mxu0 0
  %143 = vmatpush.bf16.msra.mxu0 0
  %144 = vmatpush.bf16.msra.mxu0 %v114
  %145 = vmatpush.bf16.msra.mxu0 %v112
  %146 = vmatpush.bf16.msra.mxu0 %v110
  %147 = vmatpush.bf16.msra.mxu0 %v108
  %148 = vmatmul.bf16.gmra.mxu0 %v125
  %v149 = vpop.f32.mrf.mxu0
  %v150 = vadd.f32 %v80, %v149
  %v151 = vpop.f32.mrf.mxu0
  %152 = vdwg.mxu0
  %v153 = vld [vmem:[%s5] sm:$0xff]
  %v154 = vmul.f32 %v150, 0.5
  %v155 = vmul.f32 %v154, 1.442695
  %v156 = vpow.pop %v155
  %v157 = vmul.f32 %v153, %v156
  %v158 = vadd.f32 %v137, %v157
  %159 = vst [vmem:[%s6] sm:$0xff] %v158
  %160 = vst [vmem:[%s6 + $0x8] sm:$0xff] %v137
  %161 = vst [vmem:[%s6 + $0x10] sm:$0xff] %v150
  // Predicated region
  $region26: #{dense_mmd_encoder_forward.1} parent=0 // pred_check
    _
  $region27: #{dense_mmd_encoder_forward.1} parent=0 // pred_check_branch
    %163 = sbr.rel (0) target = $region29
  $region28: #{dense_mmd_encoder_forward.1} parent=0 // pred_region
    _
  $region29: #{dense_mmd_encoder_forward.1} parent=0 // pred_fallthru
    _
  // Predicated region
  $region30: #{dense_mmd_encoder_forward.1} parent=0 // pred_check
    _
  $region31: #{dense_mmd_encoder_forward.1} parent=0 // pred_check_branch
    %165 = sbr.rel (0) target = $region33
  $region32: #{dense_mmd_encoder_forward.1} parent=0 // pred_region
    _
  $region33: #{dense_mmd_encoder_forward.1} parent=0 // pred_fallthru
    _

</llo_original>
